<compile_context>
chip_gen: v7x
topology: tpu7x:2x2x1
jax: 0.10.0
libtpu: 0.0.40
codegen_flags: <defaults>
</compile_context>

<pallas_src>
import functools

import jax
import jax.numpy as jnp
from jax import lax
from jax.experimental import pallas as pl
from jax.experimental.pallas import tpu as pltpu

EPS = 1e-3  # BatchNorm2d eps in the PyTorch module


def _is_pow2(n):
    return n > 0 and (n & (n - 1)) == 0


# --------------------------------------------------------------------------
# Pallas kernel
# --------------------------------------------------------------------------
def _upsample_kernel(x_ref, w_ref, o_ref, xs_ref, *, H, W, Cin):
    f32 = jnp.float32
    x = x_ref[...]                          # (Cin, Lb), lanes = (n, i, j)
    Lb = x.shape[-1]
    HW = H * W

    # Boundary masks from a lane-index iota.  Lanes are packed as
    # lane = n*H*W + i*W + j with whole images per block, so the per-image
    # row/col pattern repeats along lanes; the masks also zero the roll
    # wrap-around between images and at the block edge.
    lane = lax.broadcasted_iota(jnp.int32, (Cin, Lb), 1)
    if _is_pow2(W) and _is_pow2(HW):
        col = lane & (W - 1)                # j        (bitwise: always cheap)
        pos = lane & (HW - 1)               # i*W + j
    else:
        col = lane % W
        pos = lane % HW
    m_r = col < (W - 1)                     # right neighbour exists
    m_d = pos < (HW - W)                    # lower neighbour exists

    # Shifted neighbours via XLU lane rotation + VPU masks
    # (pltpu.roll == jnp.roll, so result[k] = x[k + d]  <=>  shift = Lb - d).
    x_r = jnp.where(m_r, pltpu.roll(x, Lb - 1, axis=1), 0.0)
    x_d = jnp.where(m_d, pltpu.roll(x, Lb - W, axis=1), 0.0)
    x_dr = jnp.where(m_r & m_d, pltpu.roll(x, Lb - (W + 1), axis=1), 0.0)

    # Stack [x, x_r, x_d, x_dr, ones] into VMEM scratch (no sublane concat).
    xs_ref[0 * Cin:1 * Cin, :] = x
    xs_ref[1 * Cin:2 * Cin, :] = x_r
    xs_ref[2 * Cin:3 * Cin, :] = x_d
    xs_ref[3 * Cin:4 * Cin, :] = x_dr
    xs_ref[4 * Cin:4 * Cin + 1, :] = jnp.ones((1, Lb), f32)  # bias / BN-shift row

    # One MXU matmul: all 4 parities; bias + BN already folded into w.
    y = jnp.dot(w_ref[...], xs_ref[...], preferred_element_type=f32)

    # ReLU6 is the whole epilogue.
    o_ref[...] = jnp.minimum(jnp.maximum(y, 0.0), 6.0).astype(o_ref.dtype)


# --------------------------------------------------------------------------
# Wrapper
# --------------------------------------------------------------------------
def upsample_forward(x, w_aug, *, num_blocks=None):
    """x: (N, Cin, H, W) f32; w_aug: (4*Cout, 4*Cin+1) from pack_params."""
    N, Cin, H, W = x.shape
    HW = H * W
    L = N * HW
    Cout4 = w_aug.shape[0]
    Cout = Cout4 // 4

    if num_blocks is None:
        # 2 fat parallel steps keep both v7x TensorCores busy; single-TC
        # v5e/v6e pay at most one extra ~0.35us pipeline step.  Fall back to
        # one block if the halves would not be lane-aligned.
        num_blocks = 2 if (N % 2 == 0 and ((N // 2) * HW) % 128 == 0) else 1
    assert N % num_blocks == 0
    Lb = L // num_blocks                     # whole images per block

    # Lane-dense layout: channels on sublanes, batch*spatial on lanes.
    x_flat = jnp.transpose(x, (1, 0, 2, 3)).reshape(Cin, L)

    kernel = functools.partial(_upsample_kernel, H=H, W=W, Cin=Cin)

    cost = pl.CostEstimate(
        flops=2 * Cout4 * (4 * Cin + 1) * L,
        transcendentals=0,
        bytes_accessed=4 * (Cin * L + Cout4 * L + Cout4 * (4 * Cin + 1)),
    )

    y = pl.pallas_call(
        kernel,
        out_shape=jax.ShapeDtypeStruct((Cout4, L), jnp.float32),
        grid_spec=pltpu.PrefetchScalarGridSpec(
            num_scalar_prefetch=0,
            grid=(num_blocks,),
            in_specs=[
                pl.BlockSpec((Cin, Lb), lambda b: (0, b)),
                pl.BlockSpec(w_aug.shape, lambda b: (0, 0)),
            ],
            out_specs=pl.BlockSpec((Cout4, Lb), lambda b: (0, b)),
            scratch_shapes=[pltpu.VMEM((4 * Cin + 1, Lb), jnp.float32)],
        ),
        compiler_params=pltpu.CompilerParams(
            dimension_semantics=("parallel",)),
        cost_estimate=cost,
    )(x_flat, w_aug)

    # Interleave the parity sub-images outside the kernel (plain XLA):
    # rows of y are [EE, EO, OE, OO], lanes are (n, i, j).
    y = y.reshape(2, 2, Cout, N, H, W)          # (p, q, co, n, i, j)
    y = jnp.transpose(y, (3, 2, 4, 0, 5, 1))    # (n, co, i, p, j, q)
    return y.reshape(N, Cout, 2 * H, 2 * W)


# --------------------------------------------------------------------------
# Parameter packing: parity weight blocks + folded bias/BN (eval mode)
# --------------------------------------------------------------------------
def pack_params(p):
    wt = p['weight']                     # ConvTranspose2d weight: (Cin, Cout, 3, 3)
    b = p['bias']                        # (Cout,)
    gamma, beta, mean, var = p['bn']
    Cin, Cout = wt.shape[0], wt.shape[1]

    def A(kh, kw):                       # (Cout, Cin)
        return jnp.transpose(wt[:, :, kh, kw], (1, 0))

    Z = jnp.zeros((Cout, Cin), jnp.float32)
    # Column blocks contract against [x, x_right, x_down, x_down_right].
    w_par = jnp.concatenate([
        jnp.concatenate([A(1, 1), Z,       Z,       Z      ], axis=1),  # even/even
        jnp.concatenate([A(1, 2), A(1, 0), Z,       Z      ], axis=1),  # even/odd
        jnp.concatenate([A(2, 1), Z,       A(0, 1), Z      ], axis=1),  # odd/even
        jnp.concatenate([A(2, 2), A(2, 0), A(0, 2), A(0, 0)], axis=1),  # odd/odd
    ], axis=0).astype(jnp.float32)                                      # (4Cout, 4Cin)

    scale = gamma / jnp.sqrt(var + EPS)                  # BN scale
    shift = (b - mean) * scale + beta                    # conv bias folded in
    scale4 = jnp.tile(scale, 4)[:, None]                 # (4Cout, 1)
    shift4 = jnp.tile(shift, 4)[:, None]                 # (4Cout, 1)

    # Scale folds into the rows; shift rides the appended ones-row column.
    return jnp.concatenate([w_par * scale4, shift4], axis=1).astype(jnp.float32)


# --------------------------------------------------------------------------
# Deterministic init and pure-JAX reference
# --------------------------------------------------------------------------
def init_params(key, cin, cout):
    ks = jax.random.split(key, 6)
    wt = (0.3 * jax.random.normal(ks[0], (cin, cout, 3, 3))).astype(jnp.float32)
    b = (0.1 * jax.random.normal(ks[1], (cout,))).astype(jnp.float32)
    gamma = (1.0 + 0.1 * jax.random.normal(ks[2], (cout,))).astype(jnp.float32)
    beta = (0.1 * jax.random.normal(ks[3], (cout,))).astype(jnp.float32)
    mean = (0.1 * jax.random.normal(ks[4], (cout,))).astype(jnp.float32)
    var = jax.random.uniform(ks[5], (cout,), minval=0.5, maxval=1.5).astype(jnp.float32)
    return dict(weight=wt, bias=b, bn=(gamma, beta, mean, var))


def reference_forward(x, p):
    """ConvTranspose2d(3, s=2, p=1, op=1) + eval-mode BN + ReLU6 via lax conv."""
    wt = p['weight']
    b = p['bias']
    gamma, beta, mean, var = p['bn']

    # transposed conv == lhs-dilated conv with spatially flipped, transposed kernel
    w_oihw = jnp.transpose(wt[:, :, ::-1, ::-1], (1, 0, 2, 3))      # (Cout, Cin, 3, 3)
    y = lax.conv_general_dilated(
        x, w_oihw, window_strides=(1, 1),
        padding=((1, 2), (1, 2)), lhs_dilation=(2, 2),
        dimension_numbers=('NCHW', 'OIHW', 'NCHW'))
    y = y + b.reshape(1, -1, 1, 1)

    g, bt, m, v = (t.reshape(1, -1, 1, 1) for t in (gamma, beta, mean, var))
    y = (y - m) / jnp.sqrt(v + EPS) * g + bt
    return jnp.clip(y, 0.0, 6.0)


# --------------------------------------------------------------------------
if __name__ == "__main__":
    N, Cin, Cout, H, W = 2, 8, 4, 16, 16
    key = jax.random.PRNGKey(0)
    kx, kp = jax.random.split(key)

    x = jax.random.normal(kx, (N, Cin, H, W), dtype=jnp.float32)
    params = init_params(kp, Cin, Cout)
    w_aug = pack_params(params)

    out = jax.block_until_ready(upsample_forward(x, w_aug))
    ref = jax.block_until_ready(reference_forward(x, params))

    assert out.shape == (N, Cout, 2 * H, 2 * W) and out.dtype == jnp.float32
    max_err = float(jnp.max(jnp.abs(out - ref)))
    if max_err > 2e-3:
        raise AssertionError(f"Pallas kernel mismatch vs reference: max|err|={max_err}")
    print("KERNEL_OK")
</pallas_src>

<mosaic_0001>
module attributes {stable_mosaic.version = 11 : i64} {
  func.func @_upsample_kernel(%arg0: i32, %arg1: memref<8x256xf32, #tpu.memory_space<vmem>>, %arg2: memref<16x33xf32, #tpu.memory_space<vmem>>, %arg3: memref<16x256xf32, #tpu.memory_space<vmem>>, %arg4: memref<33x256xf32, #tpu.memory_space<vmem>>) attributes {dimension_semantics = [#tpu.dimension_semantics<parallel>], iteration_bounds = array<i64: 2>, scalar_prefetch = 0 : i64, scratch_operands = 1 : i64, tpu.core_type = #tpu.core_type<tc>, window_params = [{transform_indices = @transform_0, window_bounds = array<i64: 8, 256>}, {pipeline_mode = #tpu.pipeline_mode<synchronous>, transform_indices = @transform_1, window_bounds = array<i64: 16, 33>}, {transform_indices = @transform_2, window_bounds = array<i64: 16, 256>}]} {
    %c0 = arith.constant 0 : index
    %c0_0 = arith.constant 0 : index
    %0 = vector.load %arg1[%c0, %c0_0] : memref<8x256xf32, #tpu.memory_space<vmem>>, vector<8x256xf32>
    %1 = tpu.iota {dimensions = array<i32: 1>} : vector<8x256xi32>
    %c15_i32 = arith.constant 15 : i32
    %2 = vector.broadcast %c15_i32 : i32 to vector<8x256xi32>
    %3 = arith.andi %1, %2 : vector<8x256xi32>
    %c255_i32 = arith.constant 255 : i32
    %4 = vector.broadcast %c255_i32 : i32 to vector<8x256xi32>
    %5 = arith.andi %1, %4 : vector<8x256xi32>
    %c15_i32_1 = arith.constant 15 : i32
    %6 = vector.broadcast %c15_i32_1 : i32 to vector<8x256xi32>
    %7 = arith.cmpi slt, %3, %6 : vector<8x256xi32>
    %c240_i32 = arith.constant 240 : i32
    %8 = vector.broadcast %c240_i32 : i32 to vector<8x256xi32>
    %9 = arith.cmpi slt, %5, %8 : vector<8x256xi32>
    %c255_i32_2 = arith.constant 255 : i32
    %10 = tpu.dynamic_rotate %0 by %c255_i32_2 dim 1 : vector<8x256xf32>, i32 -> vector<8x256xf32>
    %cst = arith.constant 0.000000e+00 : f32
    %11 = vector.broadcast %cst : f32 to vector<8x256xf32>
    %12 = arith.select %7, %10, %11 : vector<8x256xi1>, vector<8x256xf32>
    %c240_i32_3 = arith.constant 240 : i32
    %13 = tpu.dynamic_rotate %0 by %c240_i32_3 dim 1 : vector<8x256xf32>, i32 -> vector<8x256xf32>
    %cst_4 = arith.constant 0.000000e+00 : f32
    %14 = vector.broadcast %cst_4 : f32 to vector<8x256xf32>
    %15 = arith.select %9, %13, %14 : vector<8x256xi1>, vector<8x256xf32>
    %16 = arith.andi %7, %9 : vector<8x256xi1>
    %c239_i32 = arith.constant 239 : i32
    %17 = tpu.dynamic_rotate %0 by %c239_i32 dim 1 : vector<8x256xf32>, i32 -> vector<8x256xf32>
    %cst_5 = arith.constant 0.000000e+00 : f32
    %18 = vector.broadcast %cst_5 : f32 to vector<8x256xf32>
    %19 = arith.select %16, %17, %18 : vector<8x256xi1>, vector<8x256xf32>
    %c0_6 = arith.constant 0 : index
    %c0_7 = arith.constant 0 : index
    %20 = vector.load %arg4[%c0_6, %c0_7] : memref<33x256xf32, #tpu.memory_space<vmem>>, vector<8x256xf32>
    tpu.vector_store %arg4[%c0_6, %c0_7], %0 {strides = array<i32>} : memref<33x256xf32, #tpu.memory_space<vmem>>, vector<8x256xf32>,
    %c8 = arith.constant 8 : index
    %c0_8 = arith.constant 0 : index
    %21 = vector.load %arg4[%c8, %c0_8] : memref<33x256xf32, #tpu.memory_space<vmem>>, vector<8x256xf32>
    tpu.vector_store %arg4[%c8, %c0_8], %12 {strides = array<i32>} : memref<33x256xf32, #tpu.memory_space<vmem>>, vector<8x256xf32>,
    %c16 = arith.constant 16 : index
    %c0_9 = arith.constant 0 : index
    %22 = vector.load %arg4[%c16, %c0_9] : memref<33x256xf32, #tpu.memory_space<vmem>>, vector<8x256xf32>
    tpu.vector_store %arg4[%c16, %c0_9], %15 {strides = array<i32>} : memref<33x256xf32, #tpu.memory_space<vmem>>, vector<8x256xf32>,
    %c24 = arith.constant 24 : index
    %c0_10 = arith.constant 0 : index
    %23 = vector.load %arg4[%c24, %c0_10] : memref<33x256xf32, #tpu.memory_space<vmem>>, vector<8x256xf32>
    tpu.vector_store %arg4[%c24, %c0_10], %19 {strides = array<i32>} : memref<33x256xf32, #tpu.memory_space<vmem>>, vector<8x256xf32>,
    %cst_11 = arith.constant 1.000000e+00 : f32
    %24 = vector.broadcast %cst_11 : f32 to vector<1x256xf32>
    %c32 = arith.constant 32 : index
    %c0_12 = arith.constant 0 : index
    %25 = vector.load %arg4[%c32, %c0_12] : memref<33x256xf32, #tpu.memory_space<vmem>>, vector<1x256xf32>
    tpu.vector_store %arg4[%c32, %c0_12], %24 {strides = array<i32>} : memref<33x256xf32, #tpu.memory_space<vmem>>, vector<1x256xf32>,
    %c0_13 = arith.constant 0 : index
    %c0_14 = arith.constant 0 : index
    %26 = vector.load %arg2[%c0_13, %c0_14] : memref<16x33xf32, #tpu.memory_space<vmem>>, vector<16x33xf32>
    %c0_15 = arith.constant 0 : index
    %c0_16 = arith.constant 0 : index
    %27 = vector.load %arg4[%c0_15, %c0_16] : memref<33x256xf32, #tpu.memory_space<vmem>>, vector<33x256xf32>
    %cst_17 = arith.constant dense<0.000000e+00> : vector<16x256xf32>
    %28 = tpu.matmul %26, %27, %cst_17 {dimension_numbers = #tpu.dot_dimension_numbers<[1], [0], [0], [1], [0, 0, 1, 1], [], []>} : vector<16x33xf32>, vector<33x256xf32>, vector<16x256xf32> -> vector<16x256xf32>
    %cst_18 = arith.constant 0.000000e+00 : f32
    %29 = vector.broadcast %cst_18 : f32 to vector<16x256xf32>
    %30 = arith.maximumf %28, %29 : vector<16x256xf32>
    %cst_19 = arith.constant 6.000000e+00 : f32
    %31 = vector.broadcast %cst_19 : f32 to vector<16x256xf32>
    %32 = arith.minimumf %30, %31 : vector<16x256xf32>
    %c0_20 = arith.constant 0 : index
    %c0_21 = arith.constant 0 : index
    %33 = vector.load %arg3[%c0_20, %c0_21] : memref<16x256xf32, #tpu.memory_space<vmem>>, vector<16x256xf32>
    tpu.vector_store %arg3[%c0_20, %c0_21], %32 {strides = array<i32>} : memref<16x256xf32, #tpu.memory_space<vmem>>, vector<16x256xf32>,
    return
  }
  func.func @transform_0(%arg0: i32) -> (i32, i32) {
    %c0_i32 = arith.constant 0 : i32
    %c0_i32_0 = arith.constant 0 : i32
    return %c0_i32, %arg0 : i32, i32
  }
  func.func @transform_1(%arg0: i32) -> (i32, i32) {
    %c0_i32 = arith.constant 0 : i32
    %c0_i32_0 = arith.constant 0 : i32
    %c0_i32_1 = arith.constant 0 : i32
    return %c0_i32, %c0_i32_0 : i32, i32
  }
  func.func @transform_2(%arg0: i32) -> (i32, i32) {
    %c0_i32 = arith.constant 0 : i32
    %c0_i32_0 = arith.constant 0 : i32
    return %c0_i32, %arg0 : i32, i32
  }
}

</mosaic_0001>

<llo_original>
// kernel: tpu_custom_call.1
$region0: #{tpu_custom_call.1}
  #allocation0 [shape = 'u32[]', space=smem, size = 0x4, offset = 0x4, fixed_abs, tag = 'smem constant byte address 0x4 - core index']
  #allocation1 [shape = 'u32[144,128]{1,0:T(1,128)}', space=vmem, size = 0x12000, scoped, tag = 'internal scratch']
  #allocation2 [shape = 'f32[33,256]{1,0:T(8,128)}', space=vmem, size = 0xa000, scoped, tag = 'scratch operand']
  %s0 = inlined_call_operand.hbm [shape: f32[8,512], index: 0, kind: input, shape index: {}]
  %s1 = inlined_call_operand.hbm [shape: f32[16,33], index: 1, kind: input, shape index: {}]
  %s2 = inlined_call_operand.hbm [shape: f32[16,512], index: 2, kind: output, shape index: {}]
  %s3 = sld [smem:[#allocation0]]
  $region49: #{tpu_custom_call.1} parent=0
    _
  %s5 = ssub.s32 1, %s3
  %s6 = scalar_select 0, %s5, %s3
  $region1: #{tpu_custom_call.1} parent=0
    #allocation3 [shape = 'u8[16384]{0}', space=vmem, size = 0x4000, scoped, tag = 'input window, operand 0']
    #allocation4 [shape = 's32[2]{0}', space=sflag, size = 0x8, scoped, tag = 'scoped memory for tpu_custom_call.1']
    #allocation5 [shape = 's32[2]{0}', space=sflag, size = 0x8, scoped, tag = 'scoped memory for tpu_custom_call.1']
    #allocation6 [shape = 'u8[8192]{0}', space=vmem, size = 0x2000, scoped, tag = 'input window, operand 1, single buffered']
    #allocation7 [shape = 's32[1]{0}', space=sflag, size = 0x4, scoped, tag = 'scoped memory for tpu_custom_call.1']
    #allocation8 [shape = 'u8[32768]{0}', space=vmem, size = 0x8000, scoped, tag = 'output window, operand 0']
    %7 = vsyncpa [#allocation4], 0
    %s8 = scalar_lea.sflag [#allocation4], 1
    %9 = vsyncpa %s8, 0
    %10 = vsyncpa [#allocation7], 0
    %11 = vsyncpa [#allocation5], 0
    %s12 = scalar_lea.sflag [#allocation5], 1
    %13 = vsyncpa %s12, 0
    loop: start=0, step=1, limit=4
    $region2: #{tpu_custom_call.1} parent=1 // loop_pre_header
      _
    $region3: #{tpu_custom_call.1} parent=1 // loop_header
      %s15 = sphi 0, %s19
      %p16 = scmp.ge.s32.totalorder %s15, 4
      %s25 = sphi 0, %s27
      %s28 = sphi 0, %s25
      %s29 = sphi 0, %s28
      %s45 = sphi 0, %s29
      %s49 = sphi 0, %s49
      %s51 = sphi 0, %s49
      %s52 = sphi 0, %s51
      %s66 = sphi 0, %s52
      %s72 = sphi 0, %s74
      %s75 = sphi 0, %s72
      %s76 = sphi 0, %s75
      %s92 = sphi 0, %s76
    $region4: #{tpu_custom_call.1} parent=1 // loop_header_branch
      %18 = sbr.rel (%p16) target = $region8
    $region5: #{tpu_custom_call.1} parent=1 // loop_body
      %s20 = ssub.s32 %s15, 1
      %s21 = ssub.s32 %s15, 2
      %s22 = sadd.s32 %s15, 1
      %s23 = ssub.s32 %s15, %s22
      %p24 = scmp.eq.s32.totalorder %s23, 0
      %s26 = sadd.s32 %s25, 1
      %s27 = scalar_select %p24, %s25, %s26
      %p30 = pneg %p24
      %p31 = scmp.eq.s32.totalorder %s15, 1
      %p32 = por %p30, %p31
      %p33 = scmp.ne.s32.totalorder %s25, %s28
      %p34 = scmp.eq.s32.totalorder %s15, 0
      %p35 = por %p33, %p34
      %p36 = scmp.ne.s32.totalorder %s25, %s28
      %p37 = scmp.eq.s32.totalorder %s20, 1
      %p38 = por %p36, %p37
      %p39 = scmp.ne.s32.totalorder %s28, %s29
      %p40 = scmp.eq.s32.totalorder %s20, 0
      %p41 = por %p39, %p40
      %p42 = scmp.ne.s32.totalorder %s28, %s29
      %p43 = scmp.eq.s32.totalorder %s21, 1
      %p44 = por %p42, %p43
      %p46 = scmp.ne.s32.totalorder %s29, %s45
      %p47 = scmp.eq.s32.totalorder %s21, 0
      %p48 = por %p46, %p47
      %s50 = sadd.s32 %s49, 1
      %p53 = scmp.eq.s32.totalorder %s15, 1
      %p54 = scmp.ne.s32.totalorder %s49, %s51
      %p55 = scmp.eq.s32.totalorder %s15, 0
      %p56 = por %p54, %p55
      %p57 = scmp.ne.s32.totalorder %s49, %s51
      %p58 = scmp.eq.s32.totalorder %s20, 1
      %p59 = por %p57, %p58
      %p60 = scmp.ne.s32.totalorder %s51, %s52
      %p61 = scmp.eq.s32.totalorder %s20, 0
      %p62 = por %p60, %p61
      %p63 = scmp.ne.s32.totalorder %s51, %s52
      %p64 = scmp.eq.s32.totalorder %s21, 1
      %p65 = por %p63, %p64
      %p67 = scmp.ne.s32.totalorder %s52, %s66
      %p68 = scmp.eq.s32.totalorder %s21, 0
      %p69 = por %p67, %p68
      %s70 = ssub.s32 %s15, %s22
      %p71 = scmp.eq.s32.totalorder %s70, 0
      %s73 = sadd.s32 %s72, 1
      %s74 = scalar_select %p71, %s72, %s73
      %p77 = pneg %p71
      %p78 = scmp.eq.s32.totalorder %s15, 1
      %p79 = por %p77, %p78
      %p80 = scmp.ne.s32.totalorder %s72, %s75
      %p81 = scmp.eq.s32.totalorder %s15, 0
      %p82 = por %p80, %p81
      %p83 = scmp.ne.s32.totalorder %s72, %s75
      %p84 = scmp.eq.s32.totalorder %s20, 1
      %p85 = por %p83, %p84
      %p86 = scmp.ne.s32.totalorder %s75, %s76
      %p87 = scmp.eq.s32.totalorder %s20, 0
      %p88 = por %p86, %p87
      %p89 = scmp.ne.s32.totalorder %s75, %s76
      %p90 = scmp.eq.s32.totalorder %s21, 1
      %p91 = por %p89, %p90
      %p93 = scmp.ne.s32.totalorder %s76, %s92
      %p94 = scmp.eq.s32.totalorder %s21, 0
      %p95 = por %p93, %p94
      %p96 = scmp.le.s32.totalorder 1, %s15
      %p97 = scmp.lt.s32.totalorder %s15, 3
      %p98 = pnand %p96, %p97
      %p99 = pneg %p98
      // Predicated region
      $region9: #{tpu_custom_call.1} parent=5 // pred_check
        _
      $region10: #{tpu_custom_call.1} parent=5 // pred_check_branch
        %101 = sbr.rel (%p98) target = $region12
      $region11: #{tpu_custom_call.1} parent=5 // pred_region
        %s102 = ssub.s32 %s15, 1
        // Predicated region
        $region13: #{tpu_custom_call.1} parent=11 // pred_check
          %p103 = pneg %p62
        $region14: #{tpu_custom_call.1} parent=11 // pred_check_branch
          %105 = sbr.rel (%p103) target = $region16
        $region15: #{tpu_custom_call.1} parent=11 // pred_region
          %s107 = ssub.s32 256, 256
          %108 = vsyncadd [#allocation7], %s107
          %s109 = sshll.u32 [#allocation6], 4
          %s110 = int_to_ptr.vmem [resolvable:$true] %s109
          %115 = dma.hbm_to_vmem [thread:$0]  %s1, 256, %s110, [#allocation7], 128, 128, 8
        $region16: #{tpu_custom_call.1} parent=11 // pred_fallthru
          _
      $region12: #{tpu_custom_call.1} parent=5 // pred_fallthru
        _
      %p116 = scmp.lt.s32.totalorder %s15, 2
      // Predicated region
      $region17: #{tpu_custom_call.1} parent=5 // pred_check
        %p117 = pneg %p116
      $region18: #{tpu_custom_call.1} parent=5 // pred_check_branch
        %119 = sbr.rel (%p117) target = $region20
      $region19: #{tpu_custom_call.1} parent=5 // pred_region
        // Predicated region
        $region21: #{tpu_custom_call.1} parent=19 // pred_check
          %p120 = pneg %p35
        $region22: #{tpu_custom_call.1} parent=19 // pred_check_branch
          %122 = sbr.rel (%p120) target = $region24
        $region23: #{tpu_custom_call.1} parent=19 // pred_region
          %s123 = sand.u32 %s25, 1
          %s124 = scalar_lea.sflag [#allocation4], %s123
          %s125 = sand.u32 %s25, 1
          %s126 = smul.addr %s125, 16
          %s127 = scalar_lea.vmem [#allocation3], %s126
          %s128 = smul.u32 2, %s15
          %s130 = ssub.s32 256, 256
          %131 = vsyncadd %s124, %s130
          %s132 = smul.addr %s128, 128
          %s133 = scalar_lea.hbm %s0, %s132
          %s135 = sshll.u32 %s127, 4
          %s136 = int_to_ptr.vmem [resolvable:$true] %s135
          %138 = dma.hbm_to_vmem [thread:$0]  %s133, 256, %s136, %s124
        $region24: #{tpu_custom_call.1} parent=19 // pred_fallthru
          _
      $region20: #{tpu_custom_call.1} parent=5 // pred_fallthru
        _
      %p139 = scmp.le.s32.totalorder 1, %s15
      %p140 = scmp.lt.s32.totalorder %s15, 3
      %p141 = pnand %p139, %p140
      %p142 = pneg %p141
      // Predicated region
      $region25: #{tpu_custom_call.1} parent=5 // pred_check
        _
      $region26: #{tpu_custom_call.1} parent=5 // pred_check_branch
        %144 = sbr.rel (%p141) target = $region28
      $region27: #{tpu_custom_call.1} parent=5 // pred_region
        %s145 = ssub.s32 %s15, 1
        %s146 = sand.u32 %s28, 1
        %s147 = scalar_lea.sflag [#allocation4], %s146
        %s148 = sand.u32 %s28, 1
        %s149 = smul.addr %s148, 16
        %s150 = scalar_lea.vmem [#allocation3], %s149
        // Predicated region
        $region29: #{tpu_custom_call.1} parent=27 // pred_check
          %p151 = pneg %p41
        $region30: #{tpu_custom_call.1} parent=27 // pred_check_branch
          %153 = sbr.rel (%p151) target = $region32
        $region31: #{tpu_custom_call.1} parent=27 // pred_region
          %154 = dma.done %s147, 256
        $region32: #{tpu_custom_call.1} parent=27 // pred_fallthru
          _
        // Predicated region
        $region33: #{tpu_custom_call.1} parent=27 // pred_check
          %p155 = pneg %p62
        $region34: #{tpu_custom_call.1} parent=27 // pred_check_branch
          %157 = sbr.rel (%p155) target = $region36
        $region35: #{tpu_custom_call.1} parent=27 // pred_region
          %158 = dma.done [#allocation7], 256
        $region36: #{tpu_custom_call.1} parent=27 // pred_fallthru
          _
        %s159 = sand.u32 %s28, 1
        %s160 = scalar_lea.sflag [#allocation4], %s159
        %s161 = sand.u32 %s28, 1
        %s162 = smul.addr %s161, 16
        %s163 = scalar_lea.vmem [#allocation3], %s162
        %p164 = pneg %p41
        %p165 = pneg %p38
        %p166 = pneg %p62
        %p167 = pneg %p59
        %p168 = pneg %p88
        %p169 = pneg %p85
        %s170 = sand.u32 %s75, 1
        %s171 = scalar_lea.sflag [#allocation5], %s170
        %s172 = sand.u32 %s75, 1
        %s173 = smul.addr %s172, 32
        %s174 = scalar_lea.vmem [#allocation8], %s173
        %s175 = smul.u32 2, %s20
        %s176 = smul.u32 2, %s20
        %v177 = vld [vmem:[%s150] sm:$0xff]
        %v178 = vld [vmem:[%s150 + $0x8] sm:$0xff]
        %v179 = vlaneseq
        %v180 = vand.u32 %v179, 127
        %v181 = vadd.s32 %v180, 128
        %v182 = vand.u32 %v180, 15
        %v183 = vand.u32 %v181, 15
        %v184 = vand.u32 %v180, 255
        %v185 = vand.u32 %v181, 255
        %vm186 = vcmp.lt.s32.totalorder %v182, 15
        %vm187 = vcmp.lt.s32.totalorder %v183, 15
        %vm188 = vcmp.lt.s32.totalorder %v184, 240
        %vm189 = vcmp.lt.s32.totalorder %v185, 240
        %190 = vrot.lane.b32.xlu0 %v177, 127
        %v191 = vpop.permute.xlu0 %190
        %192 = vrot.lane.b32.xlu0 %v178, 127
        %v193 = vpop.permute.xlu0 %192
        %vm194 = vcmp.lt.s32.totalorder %v180, 127
        %v195 = vsel %vm194, %v191, %v193
        %v196 = vsel %vm194, %v193, %v191
        %v197 = vsel %vm186, %v195, 0.0
        %v198 = vsel %vm187, %v196, 0.0
        %199 = vrot.lane.b32.xlu0 %v177, 112
        %v200 = vpop.permute.xlu0 %199
        %201 = vrot.lane.b32.xlu0 %v178, 112
        %v202 = vpop.permute.xlu0 %201
        %vm203 = vcmp.lt.s32.totalorder %v180, 112
        %v204 = vsel %vm203, %v200, %v202
        %v205 = vsel %vm203, %v202, %v200
        %v206 = vsel %vm188, %v204, 0.0
        %v207 = vsel %vm189, %v205, 0.0
        %vm208 = vmand %vm186, %vm188
        %vm209 = vmand %vm187, %vm189
        %210 = vrot.lane.b32.xlu0 %v177, 111
        %v211 = vpop.permute.xlu0 %210
        %212 = vrot.lane.b32.xlu0 %v178, 111
        %v213 = vpop.permute.xlu0 %212
        %vm214 = vcmp.lt.s32.totalorder %v180, 111
        %v215 = vsel %vm214, %v211, %v213
        %v216 = vsel %vm214, %v213, %v211
        %v217 = vsel %vm208, %v215, 0.0
        %v218 = vsel %vm209, %v216, 0.0
        %219 = vst [vmem:[#allocation2] sm:$0xff] %v177
        %220 = vst [vmem:[#allocation2 + $0x8] sm:$0xff] %v178
        %221 = vst [vmem:[#allocation2 + $0x10] sm:$0xff] %v197
        %222 = vst [vmem:[#allocation2 + $0x18] sm:$0xff] %v198
        %223 = vst [vmem:[#allocation2 + $0x20] sm:$0xff] %v206
        %224 = vst [vmem:[#allocation2 + $0x28] sm:$0xff] %v207
        %225 = vst [vmem:[#allocation2 + $0x30] sm:$0xff] %v217
        %226 = vst [vmem:[#allocation2 + $0x38] sm:$0xff] %v218
        %v227 = vlaneseq
        %vm228 = vcmp.ge.s32.totalorder %v227, 0
        %vm229 = vcmp.lt.s32.totalorder %v227, 256
        %vm230 = vmand %vm228, %vm229
        %s231 = scalar_lea.vmem [#allocation2], 64
        %232 = vst.msk [vmem:[%s231] ss:$8 sm:$0x3] %vm230, 1.0
        %233 = vst.msk [vmem:[%s231] ss:$8 sm:$0x0] %vm230, 1.0
        %v234 = vld [vmem:[#allocation6] sm:$0xff]
        %v235 = vld [vmem:[#allocation6 + $0x8] sm:$0xff]
        %v236 = vld [vmem:[#allocation2] sm:$0xff]
        %v237 = vld [vmem:[#allocation2 + $0x8] sm:$0xff]
        %v238 = vld [vmem:[#allocation2 + $0x10] sm:$0xff]
        %v239 = vld [vmem:[#allocation2 + $0x18] sm:$0xff]
        %v240 = vld [vmem:[#allocation2 + $0x20] sm:$0xff]
        %v241 = vld [vmem:[#allocation2 + $0x28] sm:$0xff]
        %v242 = vld [vmem:[#allocation2 + $0x30] sm:$0xff]
        %v243 = vld [vmem:[#allocation2 + $0x38] sm:$0xff]
        %v244 = vld [vmem:[#allocation2 + $0x40] sm:$0x1]
        %v245 = vld [vmem:[#allocation2 + $0x48] sm:$0x1]
        %vm246 = vcmask 269312
        %v248 = vsel %vm246, %v234, 0
        %v251 = vsel %vm246, %v235, 0
        %vm253 = vcmask 1040384
        %v255 = vsel %vm253, %v244, 0
        %v258 = vsel %vm253, %v245, 0
        %260 = vmatprep.subr.mxu0 %v237
        %261 = vmatpush1.msra.mxu0 %v236
        %262 = vmatprep.subr.mxu0 %v239
        %263 = vmatpush1.msra.mxu0 %v238
        %264 = vmatprep.subr.mxu0 %v241
        %265 = vmatpush1.msra.mxu0 %v240
        %266 = vmatprep.subr.mxu0 %v243
        %267 = vmatpush1.msra.mxu0 %v242
        %268 = vmatprep.subr.mxu0 %v258
        %269 = vmatpush1.msra.mxu0 %v255
        %270 = vmatprep.subr.mxu0 0.0
        %271 = vmatpush1.msra.mxu0 0.0
        %272 = vmatprep.subr.mxu0 0.0
        %273 = vmatpush1.msra.mxu0 0.0
        %274 = vmatprep.subr.mxu0 0.0
        %275 = vmatpush1.msra.mxu0 0.0
        %276 = vmatprep.subr.mxu0 0.0
        %277 = vmatpush1.msra.mxu0 0.0
        %278 = vmatprep.subr.mxu0 0.0
        %279 = vmatpush1.msra.mxu0 0.0
        %280 = vmatprep.subr.mxu0 0.0
        %281 = vmatpush1.msra.mxu0 0.0
        %282 = vmatprep.subr.mxu0 0.0
        %283 = vmatpush1.msra.mxu0 0.0
        %284 = vmatprep.subr.mxu0 0.0
        %285 = vmatpush1.msra.mxu0 0.0
        %286 = vmatprep.subr.mxu0 0.0
        %287 = vmatpush1.msra.mxu0 0.0
        %288 = vmatprep.subr.mxu0 0.0
        %289 = vmatpush1.msra.mxu0 0.0
        %290 = vmatprep.subr.mxu0 0.0
        %291 = vmatpush1.msra.mxu0 0.0
        %292 = vmatprep.subr.mxu0 0.0
        %293 = vmatpush1.msra.mxu0 0.0
        %294 = vmatprep.subr.mxu0 0.0
        %295 = vmatpush1.msra.mxu0 0.0
        %296 = vmatprep.subr.mxu0 0.0
        %297 = vmatpush1.msra.mxu0 0.0
        %298 = vmatprep.subr.mxu0 0.0
        %299 = vmatpush1.msra.mxu0 0.0
        %300 = vmatprep.subr.mxu0 0.0
        %301 = vmatpush1.msra.mxu0 0.0
        %302 = vmatprep.subr.mxu0 0.0
        %303 = vmatpush1.msra.mxu0 0.0
        %304 = vmatprep.subr.mxu0 0.0
        %305 = vmatpush1.msra.mxu0 0.0
        %306 = vmatprep.subr.mxu0 0.0
        %307 = vmatpush1.msra.mxu0 0.0
        %308 = vmatprep.subr.mxu0 0.0
        %309 = vmatpush1.msra.mxu0 0.0
        %310 = vmatprep.subr.mxu0 0.0
        %311 = vmatpush1.msra.mxu0 0.0
        %312 = vmatprep.subr.mxu0 0.0
        %313 = vmatpush1.msra.mxu0 0.0
        %314 = vmatprep.subr.mxu0 0.0
        %315 = vmatpush1.msra.mxu0 0.0
        %316 = vmatprep.subr.mxu0 0.0
        %317 = vmatpush1.msra.mxu0 0.0
        %318 = vmatprep.subr.mxu0 0.0
        %319 = vmatpush1.msra.mxu0 0.0
        %320 = vmatprep.subr.mxu0 0.0
        %321 = vmatpush1.msra.mxu0 0.0
        %322 = vmatprep.subr.mxu0 0.0
        %323 = vmatpush1.msra.mxu0 0.0
        %324 = vmatprep.mubr.f32.mxu0 0.0
        %325 = vmatmul.mubr.f32.gmra.mrb[0].mxu0 %v248
        %v326 = vpop.f32.mrb[0].mxu0
        %v327 = vadd.f32 0.0, %v326
        %v328 = vpop.f32.mrb[0].mxu0
        %v329 = vadd.f32 0.0, %v328
        %330 = vmatprep.mubr.f32.mxu0 0.0
        %331 = vmatmul.mubr.f32.gmra.mrb[0].mxu0 %v251
        %v332 = vpop.f32.mrb[0].mxu0
        %v333 = vadd.f32 0.0, %v332
        %v334 = vpop.f32.mrb[0].mxu0
        %v335 = vadd.f32 0.0, %v334
        %336 = vdwg.mxu0
        %v337 = vmax.f32 %v327, 0.0
        %v338 = vmax.f32 %v329, 0.0
        %v339 = vmax.f32 %v333, 0.0
        %v340 = vmax.f32 %v335, 0.0
        %v341 = vmin.f32 %v337, 6.0
        %v342 = vmin.f32 %v338, 6.0
        %v343 = vmin.f32 %v339, 6.0
        %v344 = vmin.f32 %v340, 6.0
        %345 = vst [vmem:[%s174] sm:$0xff] %v341
        %346 = vst [vmem:[%s174 + $0x8] sm:$0xff] %v342
        %347 = vst [vmem:[%s174 + $0x10] sm:$0xff] %v343
        %348 = vst [vmem:[%s174 + $0x18] sm:$0xff] %v344
        %s349 = sand.u32 %s75, 1
        %s350 = scalar_lea.sflag [#allocation5], %s349
        %s351 = sand.u32 %s75, 1
        %s352 = smul.addr %s351, 32
        %s353 = scalar_lea.vmem [#allocation8], %s352
        // Predicated region
        $region37: #{tpu_custom_call.1} parent=27 // pred_check
          %p354 = pneg %p85
        $region38: #{tpu_custom_call.1} parent=27 // pred_check_branch
          %356 = sbr.rel (%p354) target = $region40
        $region39: #{tpu_custom_call.1} parent=27 // pred_region
          %s357 = smul.u32 2, %s20
          %s359 = ssub.s32 512, 512
          %360 = vsyncadd %s350, %s359
          %s361 = smul.addr %s357, 128
          %s362 = scalar_lea.hbm %s2, %s361
          %s363 = sshll.u32 %s353, 4
          %s364 = int_to_ptr.vmem [resolvable:$true] %s363
          %369 = dma.vmem_to_hbm [thread:$0]  %s364, 512, %s362, %s350, 256, 512, 16
        $region40: #{tpu_custom_call.1} parent=27 // pred_fallthru
          _
      $region28: #{tpu_custom_call.1} parent=5 // pred_fallthru
        _
      %p370 = scmp.le.s32.totalorder 2, %s15
      // Predicated region
      $region41: #{tpu_custom_call.1} parent=5 // pred_check
        %p371 = pneg %p370
      $region42: #{tpu_custom_call.1} parent=5 // pred_check_branch
        %373 = sbr.rel (%p371) target = $region44
      $region43: #{tpu_custom_call.1} parent=5 // pred_region
        %s374 = ssub.s32 %s15, 2
        // Predicated region
        $region45: #{tpu_custom_call.1} parent=43 // pred_check
          %p375 = pneg %p91
        $region46: #{tpu_custom_call.1} parent=43 // pred_check_branch
          %377 = sbr.rel (%p375) target = $region48
        $region47: #{tpu_custom_call.1} parent=43 // pred_region
          %s378 = sand.u32 %s76, 1
          %s379 = scalar_lea.sflag [#allocation5], %s378
          %s380 = sand.u32 %s76, 1
          %s381 = smul.addr %s380, 32
          %s382 = scalar_lea.vmem [#allocation8], %s381
          %383 = dma.done %s379, 512
        $region48: #{tpu_custom_call.1} parent=43 // pred_fallthru
          _
      $region44: #{tpu_custom_call.1} parent=5 // pred_fallthru
        _
    $region6: #{tpu_custom_call.1} parent=1 // loop_footer
      %s19 = sadd.s32 1, %s15
    $region7: #{tpu_custom_call.1} parent=1 // loop_footer_branch
      %14 = sbr.rel target = $region3
    $region8: #{tpu_custom_call.1} parent=1 // loop_exit
      _
    %384 = vsyncpa [#allocation4], 1
    %s385 = scalar_lea.sflag [#allocation4], 1
    %386 = vsyncpa %s385, 1
    %387 = vsyncpa [#allocation7], 1
    %388 = vsyncpa [#allocation5], 1
    %s389 = scalar_lea.sflag [#allocation5], 1
    %390 = vsyncpa %s389, 1

</llo_original>
